<compile_context>
chip_gen: v5e
topology: v5e:2x2
jax: 0.10.0
libtpu: 0.0.40
codegen_flags: <defaults>
</compile_context>

<pallas_src>
import functools

import jax
import jax.numpy as jnp
from jax.experimental import pallas as pl
from jax.experimental.pallas import tpu as pltpu

_LANE = 128
_SUBLANE = 8
_ACC_ROWS = 64            # 8 f32 vregs -> 8 independent accumulation chains
_MAX_TILE_ROWS = 8192     # (8192,128) f32 = 4 MiB/tile; 2 inputs x 2 buffers = 16 MiB
_VMEM_LIMIT_BYTES = 48 * 1024 * 1024


def _round_up(x, m):
    return (x + m - 1) // m * m


def _custom_loss_kernel(x_ref, t_ref, o_ref, acc_ref, *,
                        relative, rows, tile_rows, acc_rows,
                        tiles_per_split, need_mask):
    c = pl.program_id(0)          # split (TensorCore) index -- "parallel"
    j = pl.program_id(1)          # sequential tile index within split -- "arbitrary"

    @pl.when(j == 0)
    def _():
        acc_ref[...] = jnp.zeros_like(acc_ref)

    x = x_ref[...].astype(jnp.float32)
    t = t_ref[...].astype(jnp.float32)
    d = x - t
    if relative:
        # (x - t)/(t+eps) == x/(t+eps) - t/(t+eps); reciprocal runs on the EUP.
        d = d * pl.reciprocal(t + 1e-6, approx=False)
    sq = d * d

    def _accumulate(vals):
        # Wide accumulator: pure VPU adds, 8 independent chains, no per-step XLU.
        acc_ref[...] += jnp.sum(
            vals.reshape(tile_rows // acc_rows, acc_rows, _LANE), axis=0)

    if need_mask:
        tile_start = (c * tiles_per_split + j) * tile_rows

        @pl.when(tile_start + tile_rows <= rows)
        def _():
            _accumulate(sq)                      # full, in-range tile: no mask ops

        @pl.when(tile_start + tile_rows > rows)
        def _():
            # Overhanging / out-of-range tile: select (not arithmetic) discards
            # whatever garbage Pallas padded into the overhang region.
            row_ids = tile_start + jax.lax.broadcasted_iota(
                jnp.int32, (tile_rows, _LANE), 0)
            _accumulate(jnp.where(row_ids < rows, sq, 0.0))
    else:
        _accumulate(sq)

    @pl.when(j == pl.num_programs(1) - 1)
    def _():
        o_ref[0] = acc_ref[...]                  # lane-dense per-split partial sums


def custom_loss(inp, target, *, relative=True, percent=True):
    """Pallas implementation of CustomLoss(relative, percent).forward(input, target)."""
    assert inp.shape == target.shape
    n_elems = int(inp.size)

    x = jnp.ravel(inp)
    t = jnp.ravel(target)

    n_aligned = (n_elems // _LANE) * _LANE
    total_sq = jnp.float32(0.0)

    if n_aligned > 0:
        rows = n_aligned // _LANE
        tile_rows = min(_MAX_TILE_ROWS, _round_up(rows, _SUBLANE))
        acc_rows = _ACC_ROWS if tile_rows % _ACC_ROWS == 0 else _SUBLANE
        total_tiles = pl.cdiv(rows, tile_rows)
        splits = 2 if total_tiles > 1 else 1            # dual-TC split (v7x)
        tiles_per_split = pl.cdiv(total_tiles, splits)
        need_mask = (rows % tile_rows != 0) or (splits * tiles_per_split != total_tiles)

        if n_aligned == n_elems:
            x_main, t_main = x, t
        else:
            x_main, t_main = x[:n_aligned], t[:n_aligned]
        x2 = x_main.reshape(rows, _LANE)
        t2 = t_main.reshape(rows, _LANE)

        if splits * tiles_per_split == total_tiles:
            def in_map(c, j):
                return (c * tiles_per_split + j, 0)
        else:
            def in_map(c, j):
                # Clamp duplicate trailing tiles; their rows get fully masked.
                return (jnp.minimum(c * tiles_per_split + j, total_tiles - 1), 0)

        kernel = functools.partial(
            _custom_loss_kernel,
            relative=bool(relative),
            rows=rows,
            tile_rows=tile_rows,
            acc_rows=acc_rows,
            tiles_per_split=tiles_per_split,
            need_mask=need_mask,
        )

        partials = pl.pallas_call(
            kernel,
            out_shape=jax.ShapeDtypeStruct((splits, acc_rows, _LANE), jnp.float32),
            grid_spec=pltpu.PrefetchScalarGridSpec(
                num_scalar_prefetch=0,
                grid=(splits, tiles_per_split),
                in_specs=[
                    pl.BlockSpec((tile_rows, _LANE), in_map),
                    pl.BlockSpec((tile_rows, _LANE), in_map),
                ],
                out_specs=pl.BlockSpec((1, acc_rows, _LANE), lambda c, j: (c, 0, 0)),
                scratch_shapes=[pltpu.VMEM((acc_rows, _LANE), jnp.float32)],
            ),
            compiler_params=pltpu.CompilerParams(
                dimension_semantics=("parallel", "arbitrary"),
                vmem_limit_bytes=_VMEM_LIMIT_BYTES,
            ),
            cost_estimate=pl.CostEstimate(
                flops=(4 if relative else 3) * n_aligned,
                transcendentals=(n_aligned if relative else 0),
                bytes_accessed=2 * 4 * n_aligned,
            ),
        )(x2, t2)
        total_sq = total_sq + jnp.sum(partials)

    if n_aligned != n_elems:
        # <128-element ragged tail: plain JAX; avoids re-materializing (padding or
        # copying) the whole flattened arrays just for lane alignment.
        xt = x[n_aligned:].astype(jnp.float32)
        tt = t[n_aligned:].astype(jnp.float32)
        dt = xt - tt
        if relative:
            dt = dt / (tt + 1e-6)
        total_sq = total_sq + jnp.sum(dt * dt)

    mse = total_sq / jnp.float32(n_elems)
    if relative:
        loss = jnp.sqrt(mse + 1e-6)
    else:
        loss = jnp.sqrt(mse)
    if percent:
        loss = 100.0 * loss
    return loss


def _reference(inp, target, relative, percent):
    inp = inp.astype(jnp.float32)
    target = target.astype(jnp.float32)
    if relative:
        mse = jnp.mean((inp / (target + 1e-6) - target / (target + 1e-6)) ** 2)
        loss = jnp.sqrt(mse + 1e-6)
    else:
        loss = jnp.sqrt(jnp.mean((inp - target) ** 2))
    if percent:
        loss = 100.0 * loss
    return loss


if __name__ == "__main__":
    key = jax.random.PRNGKey(0)
    k1, k2, k3, k4 = jax.random.split(key, 4)

    # Small NCHW-shaped tensors, consistent with the regression-net context.
    cases = [
        (jax.random.normal(k1, (2, 4, 16, 16), dtype=jnp.float32),
         jax.random.normal(k2, (2, 4, 16, 16), dtype=jnp.float32) + 1.0),
        # Lane-misaligned element count: exercises aligned-prefix kernel + JAX tail.
        (jax.random.normal(k3, (2, 3, 25, 28), dtype=jnp.float32),
         jax.random.normal(k4, (2, 3, 25, 28), dtype=jnp.float32) + 1.0),
    ]

    ok = True
    for x, y in cases:
        for relative in (False, True):
            for percent in (False, True):
                got = jax.block_until_ready(
                    custom_loss(x, y, relative=relative, percent=percent))
                ref = _reference(x, y, relative, percent)
                if not jnp.allclose(got, ref, rtol=1e-4, atol=1e-5):
                    ok = False

    if ok:
        print("KERNEL_OK")
</pallas_src>

<mosaic_0001>
module attributes {stable_mosaic.version = 11 : i64} {
  func.func @_custom_loss_kernel(%arg0: i32, %arg1: i32, %arg2: memref<16x128xf32, #tpu.memory_space<vmem>>, %arg3: memref<16x128xf32, #tpu.memory_space<vmem>>, %arg4: memref<1x8x128xf32, #tpu.memory_space<vmem>>, %arg5: memref<8x128xf32, #tpu.memory_space<vmem>>) attributes {dimension_semantics = [#tpu.dimension_semantics<parallel>, #tpu.dimension_semantics<arbitrary>], iteration_bounds = array<i64: 1, 1>, scalar_prefetch = 0 : i64, scratch_operands = 1 : i64, tpu.core_type = #tpu.core_type<tc>, window_params = [{transform_indices = @transform_0, window_bounds = array<i64: 16, 128>}, {transform_indices = @transform_1, window_bounds = array<i64: 16, 128>}, {transform_indices = @transform_2, window_bounds = array<i64: 1, 8, 128>}]} {
    %c0_i32 = arith.constant 0 : i32
    %0 = arith.cmpi eq, %arg1, %c0_i32 : i32
    %1 = arith.extui %0 : i1 to i32
    %c0_i32_0 = arith.constant 0 : i32
    %2 = arith.cmpi ne, %1, %c0_i32_0 : i32
    scf.if %2 {
      %cst_10 = arith.constant 0.000000e+00 : f32
      %15 = vector.broadcast %cst_10 : f32 to vector<8x128xf32>
      %c0_11 = arith.constant 0 : index
      %c0_12 = arith.constant 0 : index
      %16 = vector.load %arg5[%c0_11, %c0_12] : memref<8x128xf32, #tpu.memory_space<vmem>>, vector<8x128xf32>
      tpu.vector_store %arg5[%c0_11, %c0_12], %15 {strides = array<i32>} : memref<8x128xf32, #tpu.memory_space<vmem>>, vector<8x128xf32>,
    } else {
    }
    %c0 = arith.constant 0 : index
    %c0_1 = arith.constant 0 : index
    %3 = vector.load %arg2[%c0, %c0_1] : memref<16x128xf32, #tpu.memory_space<vmem>>, vector<16x128xf32>
    %c0_2 = arith.constant 0 : index
    %c0_3 = arith.constant 0 : index
    %4 = vector.load %arg3[%c0_2, %c0_3] : memref<16x128xf32, #tpu.memory_space<vmem>>, vector<16x128xf32>
    %5 = arith.subf %3, %4 : vector<16x128xf32>
    %6 = arith.mulf %5, %5 : vector<16x128xf32>
    %c0_4 = arith.constant 0 : index
    %c0_5 = arith.constant 0 : index
    %7 = vector.load %arg5[%c0_4, %c0_5] : memref<8x128xf32, #tpu.memory_space<vmem>>, vector<8x128xf32>
    %8 = vector.shape_cast %6 : vector<16x128xf32> to vector<2x8x128xf32>
    %cst = arith.constant dense<0.000000e+00> : vector<8x128xf32>
    %9 = vector.multi_reduction <add>, %8, %cst [0] : vector<2x8x128xf32> to vector<8x128xf32>
    %10 = arith.addf %7, %9 : vector<8x128xf32>
    %c0_6 = arith.constant 0 : index
    %c0_7 = arith.constant 0 : index
    %11 = vector.load %arg5[%c0_6, %c0_7] : memref<8x128xf32, #tpu.memory_space<vmem>>, vector<8x128xf32>
    tpu.vector_store %arg5[%c0_6, %c0_7], %10 {strides = array<i32>} : memref<8x128xf32, #tpu.memory_space<vmem>>, vector<8x128xf32>,
    %c0_i32_8 = arith.constant 0 : i32
    %12 = arith.cmpi eq, %arg1, %c0_i32_8 : i32
    %13 = arith.extui %12 : i1 to i32
    %c0_i32_9 = arith.constant 0 : i32
    %14 = arith.cmpi ne, %13, %c0_i32_9 : i32
    scf.if %14 {
      %c0_10 = arith.constant 0 : index
      %c0_11 = arith.constant 0 : index
      %15 = vector.load %arg5[%c0_10, %c0_11] : memref<8x128xf32, #tpu.memory_space<vmem>>, vector<8x128xf32>
      %c0_12 = arith.constant 0 : index
      %c0_13 = arith.constant 0 : index
      %c0_14 = arith.constant 0 : index
      %16 = vector.load %arg4[%c0_12, %c0_13, %c0_14] : memref<1x8x128xf32, #tpu.memory_space<vmem>>, vector<1x8x128xf32>
      %17 = vector.shape_cast %16 : vector<1x8x128xf32> to vector<8x128xf32>
      %18 = vector.shape_cast %15 : vector<8x128xf32> to vector<1x8x128xf32>
      tpu.vector_store %arg4[%c0_12, %c0_13, %c0_14], %18 {strides = array<i32>} : memref<1x8x128xf32, #tpu.memory_space<vmem>>, vector<1x8x128xf32>,
    } else {
    }
    return
  }
  func.func @transform_0(%arg0: i32, %arg1: i32) -> (i32, i32) {
    %c1_i32 = arith.constant 1 : i32
    %0 = arith.muli %arg0, %c1_i32 : i32
    %1 = arith.addi %0, %arg1 : i32
    %c0_i32 = arith.constant 0 : i32
    %c0_i32_0 = arith.constant 0 : i32
    return %1, %c0_i32 : i32, i32
  }
  func.func @transform_1(%arg0: i32, %arg1: i32) -> (i32, i32) {
    %c1_i32 = arith.constant 1 : i32
    %0 = arith.muli %arg0, %c1_i32 : i32
    %1 = arith.addi %0, %arg1 : i32
    %c0_i32 = arith.constant 0 : i32
    %c0_i32_0 = arith.constant 0 : i32
    return %1, %c0_i32 : i32, i32
  }
  func.func @transform_2(%arg0: i32, %arg1: i32) -> (i32, i32, i32) {
    %c0_i32 = arith.constant 0 : i32
    %c0_i32_0 = arith.constant 0 : i32
    %c0_i32_1 = arith.constant 0 : i32
    return %arg0, %c0_i32, %c0_i32_0 : i32, i32, i32
  }
}

</mosaic_0001>

<llo_original>
// kernel: tpu_custom_call.1
$region0: #{tpu_custom_call.1}
  #allocation0 [shape = 'u32[]', space=smem, size = 0x4, offset = 0x4, fixed_abs, tag = 'smem constant byte address 0x4 - core index']
  #allocation1 [shape = 'u32[72,128]{1,0:T(1,128)}', space=vmem, size = 0x9000, scoped, tag = 'internal scratch']
  #allocation2 [shape = 'f32[8,128]{1,0:T(8,128)}', space=vmem, size = 0x1000, scoped, tag = 'scratch operand']
  %s0 = inlined_call_operand.hbm [shape: f32[16,128], index: 0, kind: input, shape index: {}]
  %s1 = inlined_call_operand.hbm [shape: f32[16,128], index: 1, kind: input, shape index: {}]
  %s2 = inlined_call_operand.hbm [shape: f32[1,8,128], index: 2, kind: output, shape index: {}]
  %s3 = sld [smem:[#allocation0]]
  $region34: #{tpu_custom_call.1} parent=0
    _
  %s5 = ssub.s32 1, %s3
  %s6 = scalar_select 0, %s5, %s3
  $region1: #{tpu_custom_call.1} parent=0
    #allocation3 [shape = 'u8[8192]{0}', space=vmem, size = 0x2000, scoped, tag = 'input window, operand 0, single buffered']
    #allocation4 [shape = 's32[1]{0}', space=sflag, size = 0x4, scoped, tag = 'scoped memory for tpu_custom_call.1']
    #allocation5 [shape = 's32[1]{0}', space=sflag, size = 0x4, scoped, tag = 'scoped memory for tpu_custom_call.1']
    #allocation6 [shape = 'u8[8192]{0}', space=vmem, size = 0x2000, scoped, tag = 'input window, operand 1, single buffered']
    #allocation7 [shape = 's32[1]{0}', space=sflag, size = 0x4, scoped, tag = 'scoped memory for tpu_custom_call.1']
    #allocation8 [shape = 'u8[4096]{0}', space=vmem, size = 0x1000, scoped, tag = 'output window, operand 0, single buffered']
    %7 = vsyncpa [#allocation4], 0
    %8 = vsyncpa [#allocation7], 0
    %9 = vsyncpa [#allocation5], 0
    // Predicated region
    $region2: #{tpu_custom_call.1} parent=1 // pred_check
      _
    $region3: #{tpu_custom_call.1} parent=1 // pred_check_branch
      %11 = sbr.rel (0) target = $region5
    $region4: #{tpu_custom_call.1} parent=1 // pred_region
      %s12 = sadd.s32 0, 0
      %s13 = smul.u32 2, %s12
      %15 = vsyncadd [#allocation4], 0
      %s16 = smul.addr %s13, 8
      %s17 = scalar_lea.hbm %s0, %s16
      %s18 = sshll.u32 %s17, 4
      %s19 = int_to_ptr.hbm [resolvable:$true] %s18
      %s20 = sshll.u32 [#allocation3], 4
      %s21 = int_to_ptr.vmem [resolvable:$true] %s20
      %26 = dma.hbm_to_vmem [thread:$0]  %s19, 256, %s21, [#allocation4], 128, 128, 8
    $region5: #{tpu_custom_call.1} parent=1 // pred_fallthru
      _
    // Predicated region
    $region6: #{tpu_custom_call.1} parent=1 // pred_check
      _
    $region7: #{tpu_custom_call.1} parent=1 // pred_check_branch
      %28 = sbr.rel (0) target = $region9
    $region8: #{tpu_custom_call.1} parent=1 // pred_region
      %s29 = sadd.s32 0, 0
      %s30 = smul.u32 2, %s29
      %32 = vsyncadd [#allocation7], 0
      %s33 = smul.addr %s30, 8
      %s34 = scalar_lea.hbm %s1, %s33
      %s35 = sshll.u32 %s34, 4
      %s36 = int_to_ptr.hbm [resolvable:$true] %s35
      %s37 = sshll.u32 [#allocation6], 4
      %s38 = int_to_ptr.vmem [resolvable:$true] %s37
      %43 = dma.hbm_to_vmem [thread:$0]  %s36, 256, %s38, [#allocation7], 128, 128, 8
    $region9: #{tpu_custom_call.1} parent=1 // pred_fallthru
      _
    // Predicated region
    $region10: #{tpu_custom_call.1} parent=1 // pred_check
      _
    $region11: #{tpu_custom_call.1} parent=1 // pred_check_branch
      %45 = sbr.rel (0) target = $region13
    $region12: #{tpu_custom_call.1} parent=1 // pred_region
      %47 = dma.done [#allocation4], 256
    $region13: #{tpu_custom_call.1} parent=1 // pred_fallthru
      _
    // Predicated region
    $region14: #{tpu_custom_call.1} parent=1 // pred_check
      _
    $region15: #{tpu_custom_call.1} parent=1 // pred_check_branch
      %49 = sbr.rel (0) target = $region17
    $region16: #{tpu_custom_call.1} parent=1 // pred_region
      %51 = dma.done [#allocation7], 256
    $region17: #{tpu_custom_call.1} parent=1 // pred_fallthru
      _
    %s52 = sadd.s32 0, 0
    %s53 = smul.u32 2, %s52
    %s54 = sadd.s32 0, 0
    %s55 = smul.u32 2, %s54
    %p56 = scmp.eq.s32.totalorder 0, 0
    // Predicated region
    $region18: #{tpu_custom_call.1} parent=1 // pred_check
      %p57 = pneg %p56
    $region19: #{tpu_custom_call.1} parent=1 // pred_check_branch
      %59 = sbr.rel (%p57) target = $region21
    $region20: #{tpu_custom_call.1} parent=1 // pred_region
      %60 = vst [vmem:[#allocation2] sm:$0xff] 0.0
    $region21: #{tpu_custom_call.1} parent=1 // pred_fallthru
      _
    %v61 = vld [vmem:[#allocation3] sm:$0xff]
    %v62 = vld [vmem:[#allocation3 + $0x8] sm:$0xff]
    %v63 = vld [vmem:[#allocation6] sm:$0xff]
    %v64 = vld [vmem:[#allocation6 + $0x8] sm:$0xff]
    %v65 = vsub.f32 %v61, %v63
    %v66 = vsub.f32 %v62, %v64
    %v67 = vmul.f32 %v65, %v65
    %v68 = vmul.f32 %v66, %v66
    %v69 = vld [vmem:[#allocation2] sm:$0xff]
    %v70 = vadd.f32 %v67, %v68
    %v71 = vadd.f32 %v69, %v70
    %72 = vst [vmem:[#allocation2] sm:$0xff] %v71
    // Predicated region
    $region22: #{tpu_custom_call.1} parent=1 // pred_check
      %p73 = pneg %p56
    $region23: #{tpu_custom_call.1} parent=1 // pred_check_branch
      %75 = sbr.rel (%p73) target = $region25
    $region24: #{tpu_custom_call.1} parent=1 // pred_region
      %v76 = vld [vmem:[#allocation2] sm:$0xff]
      %77 = vst [vmem:[#allocation8] sm:$0xff] %v76
    $region25: #{tpu_custom_call.1} parent=1 // pred_fallthru
      _
    // Predicated region
    $region26: #{tpu_custom_call.1} parent=1 // pred_check
      _
    $region27: #{tpu_custom_call.1} parent=1 // pred_check_branch
      %79 = sbr.rel (0) target = $region29
    $region28: #{tpu_custom_call.1} parent=1 // pred_region
      %81 = vsyncadd [#allocation5], 0
      %s83 = sshll.u32 [#allocation8], 4
      %s84 = int_to_ptr.vmem [resolvable:$true] %s83
      %s85 = sshll.u32 %s2, 4
      %s86 = int_to_ptr.hbm [resolvable:$true] %s85
      %88 = dma.vmem_to_hbm [thread:$0]  %s84, 128, %s86, [#allocation5]
    $region29: #{tpu_custom_call.1} parent=1 // pred_fallthru
      _
    // Predicated region
    $region30: #{tpu_custom_call.1} parent=1 // pred_check
      _
    $region31: #{tpu_custom_call.1} parent=1 // pred_check_branch
      %90 = sbr.rel (0) target = $region33
    $region32: #{tpu_custom_call.1} parent=1 // pred_region
      %92 = dma.done [#allocation5], 128
    $region33: #{tpu_custom_call.1} parent=1 // pred_fallthru
      _
    %93 = vsyncpa [#allocation4], 1
    %94 = vsyncpa [#allocation7], 1
    %95 = vsyncpa [#allocation5], 1

</llo_original>
